<compile_context>
chip_gen: v6e
topology: v6e:2x2x1
jax: 0.10.0
libtpu: 0.0.40
codegen_flags: <defaults>
</compile_context>

<pallas_src>
import jax
import jax.numpy as jnp
from jax.experimental import pallas as pl
from jax.experimental.pallas import tpu as pltpu


def _round_up(x, m):
    return ((x + m - 1) // m) * m


def _project_kernel(tab_ref, w_ref, p_ref):
    # tab_ref: (TV, Ep) bf16 -- tile of embedding table (pad rows/cols are zero)
    # w_ref:   (Ep, Cp) bf16 -- linear weight, transposed + padded
    # p_ref:   (TV, Cp) bf16 -- P = table @ W^T tile (f32 accumulate, bf16 store)
    p_ref[...] = jnp.dot(tab_ref[...], w_ref[...],
                         preferred_element_type=jnp.float32).astype(p_ref.dtype)


def _counts_kernel(ids_ref, p_ref, b_ref, out_ref):
    # ids_ref: (TB, S)  int32 -- token ids for this batch tile
    # p_ref:   (TV, Cp) bf16  -- vocab tile of P = table @ W^T
    # b_ref:   (1, Cp)  f32   -- bias (channel-padded)
    # out_ref: (TB, Cp) f32   -- accumulated over the (last, "arbitrary") vocab axis
    v = pl.program_id(1)
    TB, S = ids_ref.shape
    TV = p_ref.shape[0]

    # Tile-local ids: subtract the vocab-tile base from the small ids tensor
    # instead of adding it to the large iota.
    ids_local = ids_ref[...] - v * TV                         # (TB, S) int32
    col = jax.lax.broadcasted_iota(jnp.int32, (TB, TV), 1)    # (TB, TV)

    # 2-D accumulation over sequence positions.  S is a static Python int, so
    # this fully unrolls with static lane slices; the live working set stays at
    # one (TB, TV) accumulator plus one compare result.
    counts = jnp.zeros((TB, TV), jnp.float32)
    for s in range(S):
        counts = counts + (col == ids_local[:, s:s + 1]).astype(jnp.float32)

    if S <= 256:
        # counts <= S are exact in bf16 up to 256 -> single-pass bf16 MXU matmul.
        partial = jnp.dot(counts.astype(jnp.bfloat16), p_ref[...],
                          preferred_element_type=jnp.float32)  # (TB, Cp)
    else:
        partial = jnp.dot(counts, p_ref[...].astype(jnp.float32),
                          preferred_element_type=jnp.float32)

    @pl.when(v == 0)
    def _():
        # Bias added once per sequence position -> S * bias, folded in here.
        out_ref[...] = jnp.float32(S) * b_ref[...] + partial

    @pl.when(v > 0)
    def _():
        out_ref[...] = out_ref[...] + partial


def logistic_regression_forward(input_ids, emb_table, fc_weight, fc_bias):
    """
    input_ids: (B, S) int32
    emb_table: (V, E) float32 (padding row already zeroed, as nn.Embedding does)
    fc_weight: (C, E) float32 (PyTorch Linear layout)
    fc_bias:   (C,)   float32
    returns:   (B, C) float32
    """
    B, S = input_ids.shape
    V, E = emb_table.shape
    C = fc_weight.shape[0]

    # Internal padded sizes / tiles.
    Cp = _round_up(C, 128)                       # lane-dense output channels
    Ep = _round_up(E, 128)                       # lane-aligned contraction dim
    TV = min(2048, _round_up(V, 16))             # vocab tile (bf16-friendly)
    Vp = _round_up(V, TV)
    TB = min(128, _round_up(B, 8))               # batch tile (<=128 for megacore)
    Bp = _round_up(B, TB)

    # Pad + cast parameters.  Table / weight go to bf16 for the MXU; padded
    # rows / columns are zero so they contribute nothing.
    tab = jnp.zeros((Vp, Ep), jnp.bfloat16).at[:V, :E].set(
        emb_table.astype(jnp.bfloat16))
    w = jnp.zeros((Ep, Cp), jnp.bfloat16).at[:E, :C].set(
        fc_weight.T.astype(jnp.bfloat16))
    bias = jnp.zeros((1, Cp), jnp.float32).at[0, :C].set(
        fc_bias.astype(jnp.float32))
    ids = jnp.zeros((Bp, S), jnp.int32).at[:B].set(input_ids.astype(jnp.int32))

    vmem_limit = 32 * 1024 * 1024   # headroom on v7x (64 MiB physical VMEM)

    # Pass 1: P = table @ W^T   (Vp, Cp) bf16, tiled over vocab rows.
    proj = pl.pallas_call(
        _project_kernel,
        out_shape=jax.ShapeDtypeStruct((Vp, Cp), jnp.bfloat16),
        grid_spec=pltpu.PrefetchScalarGridSpec(
            num_scalar_prefetch=0,
            grid=(Vp // TV,),
            in_specs=[
                pl.BlockSpec((TV, Ep), lambda i: (i, 0)),
                pl.BlockSpec((Ep, Cp), lambda i: (0, 0)),
            ],
            out_specs=pl.BlockSpec((TV, Cp), lambda i: (i, 0)),
        ),
        compiler_params=pltpu.CompilerParams(
            dimension_semantics=("parallel",),
            vmem_limit_bytes=vmem_limit),
    )(tab, w)

    # Pass 2: out = counts @ P + S * bias; vocab axis last, as the reduction.
    out = pl.pallas_call(
        _counts_kernel,
        out_shape=jax.ShapeDtypeStruct((Bp, Cp), jnp.float32),
        grid_spec=pltpu.PrefetchScalarGridSpec(
            num_scalar_prefetch=0,
            grid=(Bp // TB, Vp // TV),
            in_specs=[
                pl.BlockSpec((TB, S), lambda b, v: (b, 0)),    # ids tile
                pl.BlockSpec((TV, Cp), lambda b, v: (v, 0)),   # P vocab tile
                pl.BlockSpec((1, Cp), lambda b, v: (0, 0)),    # bias
            ],
            out_specs=pl.BlockSpec((TB, Cp), lambda b, v: (b, 0)),
        ),
        compiler_params=pltpu.CompilerParams(
            dimension_semantics=("parallel", "arbitrary"),
            vmem_limit_bytes=vmem_limit),
    )(ids, proj, bias)

    return out[:B, :C]


if __name__ == "__main__":
    # Small, deterministic config consistent with the module's __init__.
    vocab_size, embed_dim, n_classes, pad_idx = 32, 32, 4, 0
    batch, seq_len = 2, 8

    key = jax.random.PRNGKey(0)
    k_emb, k_w, k_b, k_ids = jax.random.split(key, 4)

    # nn.Embedding init ~ N(0, 1); padding_idx row zeroed.
    emb_table = jax.random.normal(k_emb, (vocab_size, embed_dim), dtype=jnp.float32)
    emb_table = emb_table.at[pad_idx].set(0.0)

    # nn.Linear init ~ U(-1/sqrt(E), 1/sqrt(E)).
    bound = 1.0 / (embed_dim ** 0.5)
    fc_weight = jax.random.uniform(k_w, (n_classes, embed_dim),
                                   minval=-bound, maxval=bound, dtype=jnp.float32)
    fc_bias = jax.random.uniform(k_b, (n_classes,),
                                 minval=-bound, maxval=bound, dtype=jnp.float32)

    input_ids = jax.random.randint(k_ids, (batch, seq_len), 0, vocab_size,
                                   dtype=jnp.int32)

    out = logistic_regression_forward(input_ids, emb_table, fc_weight, fc_bias)
    out = jax.block_until_ready(out)

    # Pure-JAX reference: same math, params quantized to bf16 to match the
    # kernel's MXU dtype (embedding gather -> linear -> sum over seq).
    emb_q = emb_table.astype(jnp.bfloat16).astype(jnp.float32)
    w_q = fc_weight.astype(jnp.bfloat16).astype(jnp.float32)
    ref = (emb_q[input_ids] @ w_q.T + fc_bias).sum(axis=1)

    assert out.shape == (batch, n_classes)
    assert jnp.allclose(out, ref, atol=3e-2, rtol=3e-2), (out, ref)
    print("KERNEL_OK")
</pallas_src>

<mosaic_0001>
module attributes {stable_mosaic.version = 11 : i64} {
  func.func @_project_kernel(%arg0: i32, %arg1: memref<32x128xbf16, #tpu.memory_space<vmem>>, %arg2: memref<128x128xbf16, #tpu.memory_space<vmem>>, %arg3: memref<32x128xbf16, #tpu.memory_space<vmem>>) attributes {dimension_semantics = [#tpu.dimension_semantics<parallel>], iteration_bounds = array<i64: 1>, scalar_prefetch = 0 : i64, scratch_operands = 0 : i64, tpu.core_type = #tpu.core_type<tc>, window_params = [{transform_indices = @transform_0, window_bounds = array<i64: 32, 128>}, {pipeline_mode = #tpu.pipeline_mode<synchronous>, transform_indices = @transform_1, window_bounds = array<i64: 128, 128>}, {transform_indices = @transform_2, window_bounds = array<i64: 32, 128>}]} {
    %c0 = arith.constant 0 : index
    %c0_0 = arith.constant 0 : index
    %0 = vector.load %arg1[%c0, %c0_0] : memref<32x128xbf16, #tpu.memory_space<vmem>>, vector<32x128xbf16>
    %c0_1 = arith.constant 0 : index
    %c0_2 = arith.constant 0 : index
    %1 = vector.load %arg2[%c0_1, %c0_2] : memref<128x128xbf16, #tpu.memory_space<vmem>>, vector<128x128xbf16>
    %cst = arith.constant dense<0.000000e+00> : vector<32x128xf32>
    %2 = tpu.matmul %0, %1, %cst {dimension_numbers = #tpu.dot_dimension_numbers<[1], [0], [0], [1], [0, 0, 1, 1], [], []>} : vector<32x128xbf16>, vector<128x128xbf16>, vector<32x128xf32> -> vector<32x128xf32>
    %3 = arith.truncf %2 : vector<32x128xf32> to vector<32x128xbf16>
    %c0_3 = arith.constant 0 : index
    %c0_4 = arith.constant 0 : index
    %4 = vector.load %arg3[%c0_3, %c0_4] : memref<32x128xbf16, #tpu.memory_space<vmem>>, vector<32x128xbf16>
    tpu.vector_store %arg3[%c0_3, %c0_4], %3 {strides = array<i32>} : memref<32x128xbf16, #tpu.memory_space<vmem>>, vector<32x128xbf16>,
    return
  }
  func.func @transform_0(%arg0: i32) -> (i32, i32) {
    %c0_i32 = arith.constant 0 : i32
    %c0_i32_0 = arith.constant 0 : i32
    return %arg0, %c0_i32 : i32, i32
  }
  func.func @transform_1(%arg0: i32) -> (i32, i32) {
    %c0_i32 = arith.constant 0 : i32
    %c0_i32_0 = arith.constant 0 : i32
    %c0_i32_1 = arith.constant 0 : i32
    return %c0_i32, %c0_i32_0 : i32, i32
  }
  func.func @transform_2(%arg0: i32) -> (i32, i32) {
    %c0_i32 = arith.constant 0 : i32
    %c0_i32_0 = arith.constant 0 : i32
    return %arg0, %c0_i32 : i32, i32
  }
}

</mosaic_0001>

<llo_original>
// kernel: tpu_custom_call.1
$region0: #{tpu_custom_call.1}
  #allocation0 [shape = 'u32[]', space=smem, size = 0x4, offset = 0x4, fixed_abs, tag = 'smem constant byte address 0x4 - core index']
  #allocation1 [shape = 'u32[144,128]{1,0:T(1,128)}', space=vmem, size = 0x12000, scoped, tag = 'internal scratch']
  %s0 = inlined_call_operand.hbm [shape: bf16[32,128], index: 0, kind: input, shape index: {}]
  %s1 = inlined_call_operand.hbm [shape: bf16[128,128], index: 1, kind: input, shape index: {}]
  %s2 = inlined_call_operand.hbm [shape: bf16[32,128], index: 2, kind: output, shape index: {}]
  %s3 = sld [smem:[#allocation0]]
  $region26: #{tpu_custom_call.1} parent=0
    _
  %s5 = ssub.s32 1, %s3
  %s6 = scalar_select 0, %s5, %s3
  $region1: #{tpu_custom_call.1} parent=0
    #allocation2 [shape = 'u8[8192]{0}', space=vmem, size = 0x2000, scoped, tag = 'input window, operand 0, single buffered']
    #allocation3 [shape = 's32[1]{0}', space=sflag, size = 0x4, scoped, tag = 'scoped memory for tpu_custom_call.1']
    #allocation4 [shape = 's32[1]{0}', space=sflag, size = 0x4, scoped, tag = 'scoped memory for tpu_custom_call.1']
    #allocation5 [shape = 'u8[32768]{0}', space=vmem, size = 0x8000, scoped, tag = 'input window, operand 1, single buffered']
    #allocation6 [shape = 's32[1]{0}', space=sflag, size = 0x4, scoped, tag = 'scoped memory for tpu_custom_call.1']
    #allocation7 [shape = 'u8[8192]{0}', space=vmem, size = 0x2000, scoped, tag = 'output window, operand 0, single buffered']
    %7 = vsyncpa [#allocation3], 0
    %8 = vsyncpa [#allocation6], 0
    %9 = vsyncpa [#allocation4], 0
    // Predicated region
    $region2: #{tpu_custom_call.1} parent=1 // pred_check
      _
    $region3: #{tpu_custom_call.1} parent=1 // pred_check_branch
      %11 = sbr.rel (0) target = $region5
    $region4: #{tpu_custom_call.1} parent=1 // pred_region
      %s13 = ssub.s32 256, 256
      %14 = vsyncadd [#allocation3], %s13
      %s15 = sshll.u32 [#allocation2], 4
      %s16 = int_to_ptr.vmem [resolvable:$true] %s15
      %21 = dma.hbm_to_vmem [thread:$0]  %s0, 256, %s16, [#allocation3], 64, 64, 4
    $region5: #{tpu_custom_call.1} parent=1 // pred_fallthru
      _
    // Predicated region
    $region6: #{tpu_custom_call.1} parent=1 // pred_check
      _
    $region7: #{tpu_custom_call.1} parent=1 // pred_check_branch
      %23 = sbr.rel (0) target = $region9
    $region8: #{tpu_custom_call.1} parent=1 // pred_region
      %s25 = ssub.s32 1024, 1024
      %26 = vsyncadd [#allocation6], %s25
      %s27 = sshll.u32 [#allocation5], 4
      %s28 = int_to_ptr.vmem [resolvable:$true] %s27
      %33 = dma.hbm_to_vmem [thread:$0]  %s1, 1024, %s28, [#allocation6], 64, 64, 4
    $region9: #{tpu_custom_call.1} parent=1 // pred_fallthru
      _
    // Predicated region
    $region10: #{tpu_custom_call.1} parent=1 // pred_check
      _
    $region11: #{tpu_custom_call.1} parent=1 // pred_check_branch
      %35 = sbr.rel (0) target = $region13
    $region12: #{tpu_custom_call.1} parent=1 // pred_region
      %36 = dma.done [#allocation3], 256
    $region13: #{tpu_custom_call.1} parent=1 // pred_fallthru
      _
    // Predicated region
    $region14: #{tpu_custom_call.1} parent=1 // pred_check
      _
    $region15: #{tpu_custom_call.1} parent=1 // pred_check_branch
      %38 = sbr.rel (0) target = $region17
    $region16: #{tpu_custom_call.1} parent=1 // pred_region
      %39 = dma.done [#allocation6], 1024
    $region17: #{tpu_custom_call.1} parent=1 // pred_fallthru
      _
    %v41 = vld [vmem:[#allocation2] sm:$0xf]
    %v42 = vld [vmem:[#allocation2 + $0x4] sm:$0xf]
    %v43 = vld [vmem:[#allocation2 + $0x8] sm:$0xf]
    %v44 = vld [vmem:[#allocation2 + $0xc] sm:$0xf]
    %v45 = vld [vmem:[#allocation5] sm:$0xf]
    %v46 = vld [vmem:[#allocation5 + $0x4] sm:$0xf]
    %v47 = vld [vmem:[#allocation5 + $0x8] sm:$0xf]
    %v48 = vld [vmem:[#allocation5 + $0xc] sm:$0xf]
    %v49 = vld [vmem:[#allocation5 + $0x10] sm:$0xf]
    %v50 = vld [vmem:[#allocation5 + $0x14] sm:$0xf]
    %v51 = vld [vmem:[#allocation5 + $0x18] sm:$0xf]
    %v52 = vld [vmem:[#allocation5 + $0x1c] sm:$0xf]
    %v53 = vld [vmem:[#allocation5 + $0x20] sm:$0xf]
    %v54 = vld [vmem:[#allocation5 + $0x24] sm:$0xf]
    %v55 = vld [vmem:[#allocation5 + $0x28] sm:$0xf]
    %v56 = vld [vmem:[#allocation5 + $0x2c] sm:$0xf]
    %v57 = vld [vmem:[#allocation5 + $0x30] sm:$0xf]
    %v58 = vld [vmem:[#allocation5 + $0x34] sm:$0xf]
    %v59 = vld [vmem:[#allocation5 + $0x38] sm:$0xf]
    %v60 = vld [vmem:[#allocation5 + $0x3c] sm:$0xf]
    %v65 = vunpack.c.l.b16 %v41
    %v66 = vunpack.c.l.b16 %v42
    %v67 = vunpack.c.l.b16 %v43
    %v68 = vunpack.c.l.b16 %v44
    %v69 = vpack.c.b16 %v66, %v65
    %v70 = vpack.c.b16 %v68, %v67
    %v89 = vunpack.c.l.b16 %v45
    %v90 = vunpack.c.l.b16 %v46
    %v91 = vunpack.c.l.b16 %v47
    %v92 = vunpack.c.l.b16 %v48
    %v93 = vunpack.c.l.b16 %v49
    %v94 = vunpack.c.l.b16 %v50
    %v95 = vunpack.c.l.b16 %v51
    %v96 = vunpack.c.l.b16 %v52
    %v97 = vunpack.c.l.b16 %v53
    %v98 = vunpack.c.l.b16 %v54
    %v99 = vunpack.c.l.b16 %v55
    %v100 = vunpack.c.l.b16 %v56
    %v101 = vunpack.c.l.b16 %v57
    %v102 = vunpack.c.l.b16 %v58
    %v103 = vunpack.c.l.b16 %v59
    %v104 = vunpack.c.l.b16 %v60
    %v105 = vpack.c.b16 %v90, %v89
    %v106 = vpack.c.b16 %v92, %v91
    %v107 = vpack.c.b16 %v94, %v93
    %v108 = vpack.c.b16 %v96, %v95
    %v109 = vpack.c.b16 %v98, %v97
    %v110 = vpack.c.b16 %v100, %v99
    %v111 = vpack.c.b16 %v102, %v101
    %v112 = vpack.c.b16 %v104, %v103
    %121 = vmatprep.subr.bf16.mxu0 0
    %122 = vmatpush1.bf16.msra.mxu0 %v112
    %123 = vmatprep.subr.bf16.mxu0 0
    %124 = vmatpush1.bf16.msra.mxu0 %v111
    %125 = vmatprep.subr.bf16.mxu0 0
    %126 = vmatpush1.bf16.msra.mxu0 %v110
    %127 = vmatprep.subr.bf16.mxu0 0
    %128 = vmatpush1.bf16.msra.mxu0 %v109
    %129 = vmatprep.subr.bf16.mxu0 0
    %130 = vmatpush1.bf16.msra.mxu0 %v108
    %131 = vmatprep.subr.bf16.mxu0 0
    %132 = vmatpush1.bf16.msra.mxu0 %v107
    %133 = vmatprep.subr.bf16.mxu0 0
    %134 = vmatpush1.bf16.msra.mxu0 %v106
    %135 = vmatprep.subr.bf16.mxu0 0
    %136 = vmatpush1.bf16.msra.mxu0 %v105
    %137 = vmatprep.subr.bf16.mxu0 0
    %138 = vmatpush2.bf16.msra.mxu0 0
    %139 = vmatprep.subr.bf16.mxu0 0
    %140 = vmatpush2.bf16.msra.mxu0 0
    %141 = vmatprep.subr.bf16.mxu0 0
    %142 = vmatpush2.bf16.msra.mxu0 0
    %143 = vmatprep.subr.bf16.mxu0 0
    %144 = vmatpush2.bf16.msra.mxu0 0
    %145 = vmatprep.subr.bf16.mxu0 0
    %146 = vmatpush2.bf16.msra.mxu0 0
    %147 = vmatprep.subr.bf16.mxu0 0
    %148 = vmatpush2.bf16.msra.mxu0 0
    %149 = vmatprep.subr.bf16.mxu0 0
    %150 = vmatpush2.bf16.msra.mxu0 0
    %151 = vmatprep.subr.bf16.mxu0 0
    %152 = vmatpush2.bf16.msra.mxu0 0
    %153 = vmatprep.mubr.bf16.mxu0 0
    %154 = vmatmul.mubr.bf16.gmra.mxu0 %v69
    %v155 = vpop.f32.mrf.mxu0
    %v156 = vadd.f32 0.0, %v155
    %v157 = vpop.f32.mrf.mxu0
    %v158 = vpop.f32.mrf.mxu0
    %v159 = vadd.f32 0.0, %v158
    %v160 = vpop.f32.mrf.mxu0
    %161 = vmatprep.mubr.bf16.mxu0 0
    %162 = vmatmul.mubr.bf16.gmra.mxu0 %v70
    %v163 = vpop.f32.mrf.mxu0
    %v164 = vadd.f32 0.0, %v163
    %v165 = vpop.f32.mrf.mxu0
    %v166 = vpop.f32.mrf.mxu0
    %v167 = vadd.f32 0.0, %v166
    %v168 = vpop.f32.mrf.mxu0
    %169 = vdwg.mxu0
    %v170 = vpack.c.bf16 %v159, %v156
    %v171 = vpack.c.bf16 %v167, %v164
    %v174 = vunpack.c.l.b16 %v170
    %v175 = vunpack.c.h.b16 %v170
    %v176 = vunpack.c.l.b16 %v171
    %v177 = vunpack.c.h.b16 %v171
    %v178 = vpack.c.b16 %v174, %v174
    %v179 = vpack.c.b16 %v175, %v175
    %v180 = vpack.c.b16 %v176, %v176
    %v181 = vpack.c.b16 %v177, %v177
    %186 = vst [vmem:[#allocation7] sm:$0xf] %v178
    %187 = vst [vmem:[#allocation7 + $0x4] sm:$0xf] %v179
    %188 = vst [vmem:[#allocation7 + $0x8] sm:$0xf] %v180
    %189 = vst [vmem:[#allocation7 + $0xc] sm:$0xf] %v181
    // Predicated region
    $region18: #{tpu_custom_call.1} parent=1 // pred_check
      _
    $region19: #{tpu_custom_call.1} parent=1 // pred_check_branch
      %191 = sbr.rel (0) target = $region21
    $region20: #{tpu_custom_call.1} parent=1 // pred_region
      %s193 = ssub.s32 256, 256
      %194 = vsyncadd [#allocation4], %s193
      %s195 = sshll.u32 [#allocation7], 4
      %s196 = int_to_ptr.vmem [resolvable:$true] %s195
      %201 = dma.vmem_to_hbm [thread:$0]  %s196, 256, %s2, [#allocation4], 64, 64, 4
    $region21: #{tpu_custom_call.1} parent=1 // pred_fallthru
      _
    // Predicated region
    $region22: #{tpu_custom_call.1} parent=1 // pred_check
      _
    $region23: #{tpu_custom_call.1} parent=1 // pred_check_branch
      %203 = sbr.rel (0) target = $region25
    $region24: #{tpu_custom_call.1} parent=1 // pred_region
      %204 = dma.done [#allocation4], 256
    $region25: #{tpu_custom_call.1} parent=1 // pred_fallthru
      _
    %205 = vsyncpa [#allocation3], 1
    %206 = vsyncpa [#allocation6], 1
    %207 = vsyncpa [#allocation4], 1

</llo_original>
